<compile_context>
chip_gen: v7x
topology: tpu7x:2x2x1
jax: 0.10.0
libtpu: 0.0.40
codegen_flags: <defaults>
</compile_context>

<pallas_src>
import math

import jax
import jax.numpy as jnp
from jax import lax
from jax.experimental import pallas as pl
from jax.experimental.pallas import tpu as pltpu

TOK_BLOCK = 256  # default tokens per grid step (output tile = (TOK_BLOCK, D))


def _round_up(x, m):
    return (x + m - 1) // m * m


def embed_kernel(ids_ref, table_ref, out_ref):
    """One grid step: gather `tb` embedding rows via a one-hot MXU matmul.

    ids_ref:   VMEM (tb, 1)     int32 token ids for this tile
    table_ref: VMEM (V_pad, D)  embedding table (constant block index ->
                                resident across the whole grid)
    out_ref:   VMEM (tb, D)     gathered embeddings
    """
    tb = out_ref.shape[0]
    v_pad = table_ref.shape[0]

    # (tb, V_pad) one-hot on the VPU: ids column broadcast against a lane iota.
    # Ids that are negative or >= V match no column -> that output row is 0
    # (graceful replacement for torch's IndexError; no silent OOB VMEM read).
    vocab_iota = lax.broadcasted_iota(jnp.int32, (tb, v_pad), 1)
    one_hot = (ids_ref[...] == vocab_iota).astype(table_ref.dtype)

    # One dense MXU matmul replaces `tb` dynamic sublane gathers + masked stores.
    out_ref[...] = jnp.dot(
        one_hot, table_ref[...], preferred_element_type=jnp.float32
    ).astype(out_ref.dtype)


def embedder(ids, table, *, tok_block=TOK_BLOCK):
    """ids: int array [...], table: [V, D] -> embeddings [..., D] in table.dtype.

    Equivalent to torch.nn.Embedding.from_pretrained(table, freeze=True)(ids).
    """
    V, D = table.shape
    batch_shape = ids.shape
    N = math.prod(batch_shape)

    # --- tiling -------------------------------------------------------------
    # Big token tiles amortize per-step overhead and keep the output store
    # lane/sublane dense, but never exceed the (sublane-rounded) token count.
    tb = _round_up(min(tok_block, _round_up(N, 8)), 8)
    n_pad = _round_up(N, tb)
    # Pad the vocab (matmul contraction dim) to a 128 multiple for full MXU tiles.
    v_pad = _round_up(V, 128)

    ids_flat = ids.reshape(-1).astype(jnp.int32)
    if n_pad != N:
        ids_flat = jnp.pad(ids_flat, (0, n_pad - N))
    ids_col = ids_flat.reshape(n_pad, 1)

    table_p = table
    if v_pad != V:
        table_p = jnp.pad(table, ((0, v_pad - V), (0, 0)))

    # --- VMEM budget ----------------------------------------------------------
    itemsize = table.dtype.itemsize
    table_bytes = v_pad * D * itemsize
    tile_bytes = tb * D * itemsize + tb * 4  # out tile + ids tile
    # Allow for pipeliner double-buffering of every operand + compiler scratch.
    vmem_bytes = 2 * table_bytes + 2 * tile_bytes + (4 << 20)
    assert vmem_bytes <= (64 << 20), (
        "embedding table too large to keep resident in VMEM"
    )
    # TODO(synk): for vocabularies where V_pad*D*itemsize approaches VMEM, switch
    # the table to memory_space=pl.ANY (HBM) and gather rows with
    # pltpu.make_async_copy into a double-buffered VMEM scratch instead.

    out = pl.pallas_call(
        embed_kernel,
        out_shape=jax.ShapeDtypeStruct((n_pad, D), table.dtype),
        grid=(n_pad // tb,),
        in_specs=[
            # ids streamed tile-by-tile through VMEM.
            pl.BlockSpec((tb, 1), lambda i: (i, 0)),
            # full table; constant block index -> fetched once, resident.
            pl.BlockSpec((v_pad, D), lambda i: (0, 0)),
        ],
        out_specs=pl.BlockSpec((tb, D), lambda i: (i, 0)),
        compiler_params=pltpu.CompilerParams(
            # Each step writes a disjoint output tile -> token axis is parallel
            # (lets v7x shard across both TensorCores; no-op on v5e/v6e).
            dimension_semantics=("parallel",),
            vmem_limit_bytes=int(vmem_bytes),
        ),
    )(ids_col, table_p)

    return out[:N].reshape(*batch_shape, D)


if __name__ == "__main__":
    key = jax.random.PRNGKey(0)
    k_tab, k_ids = jax.random.split(key)

    V, D = 32, 128      # vocab size, embedding dim (text_embedding_vectors shape)
    B, S = 2, 8         # batch, sequence length

    # Deterministic "pretrained" (frozen) embedding table + token ids.
    table = jax.random.normal(k_tab, (V, D), dtype=jnp.float32)
    ids = jax.random.randint(k_ids, (B, S), 0, V, dtype=jnp.int32)

    out = embedder(ids, table)
    out = jax.block_until_ready(out)

    # Reference: plain embedding lookup (what torch.nn.Embedding does).
    ref = jnp.take(table, ids, axis=0)
    assert out.shape == (B, S, D)
    # Tolerance covers the case where the MXU evaluates the f32 one-hot matmul
    # with bf16 passes (<=2^-9 relative); wrong-row bugs produce O(1) errors.
    assert jnp.allclose(out, ref, rtol=5e-3, atol=5e-3), "Pallas embedding lookup mismatch"

    print("KERNEL_OK")
</pallas_src>

<mosaic_0001>
module attributes {stable_mosaic.version = 11 : i64} {
  func.func @embed_kernel(%arg0: i32, %arg1: memref<16x1xi32, #tpu.memory_space<vmem>>, %arg2: memref<128x128xf32, #tpu.memory_space<vmem>>, %arg3: memref<16x128xf32, #tpu.memory_space<vmem>>) attributes {dimension_semantics = [#tpu.dimension_semantics<parallel>], iteration_bounds = array<i64: 1>, scalar_prefetch = 0 : i64, scratch_operands = 0 : i64, tpu.core_type = #tpu.core_type<tc>, window_params = [{transform_indices = @transform_0, window_bounds = array<i64: 16, 1>}, {pipeline_mode = #tpu.pipeline_mode<synchronous>, transform_indices = @transform_1, window_bounds = array<i64: 128, 128>}, {transform_indices = @transform_2, window_bounds = array<i64: 16, 128>}]} {
    %0 = tpu.iota {dimensions = array<i32: 1>} : vector<16x128xi32>
    %c0 = arith.constant 0 : index
    %c0_0 = arith.constant 0 : index
    %1 = vector.load %arg1[%c0, %c0_0] : memref<16x1xi32, #tpu.memory_space<vmem>>, vector<16x1xi32>
    %2 = vector.broadcast %1 : vector<16x1xi32> to vector<16x128xi32>
    %3 = arith.cmpi eq, %2, %0 : vector<16x128xi32>
    %4 = arith.extui %3 : vector<16x128xi1> to vector<16x128xi32>
    %5 = arith.sitofp %4 : vector<16x128xi32> to vector<16x128xf32>
    %c0_1 = arith.constant 0 : index
    %c0_2 = arith.constant 0 : index
    %6 = vector.load %arg2[%c0_1, %c0_2] : memref<128x128xf32, #tpu.memory_space<vmem>>, vector<128x128xf32>
    %cst = arith.constant dense<0.000000e+00> : vector<16x128xf32>
    %7 = tpu.matmul %5, %6, %cst {dimension_numbers = #tpu.dot_dimension_numbers<[1], [0], [0], [1], [0, 0, 1, 1], [], []>} : vector<16x128xf32>, vector<128x128xf32>, vector<16x128xf32> -> vector<16x128xf32>
    %c0_3 = arith.constant 0 : index
    %c0_4 = arith.constant 0 : index
    %8 = vector.load %arg3[%c0_3, %c0_4] : memref<16x128xf32, #tpu.memory_space<vmem>>, vector<16x128xf32>
    tpu.vector_store %arg3[%c0_3, %c0_4], %7 {strides = array<i32>} : memref<16x128xf32, #tpu.memory_space<vmem>>, vector<16x128xf32>,
    return
  }
  func.func @transform_0(%arg0: i32) -> (i32, i32) {
    %c0_i32 = arith.constant 0 : i32
    %c0_i32_0 = arith.constant 0 : i32
    return %arg0, %c0_i32 : i32, i32
  }
  func.func @transform_1(%arg0: i32) -> (i32, i32) {
    %c0_i32 = arith.constant 0 : i32
    %c0_i32_0 = arith.constant 0 : i32
    %c0_i32_1 = arith.constant 0 : i32
    return %c0_i32, %c0_i32_0 : i32, i32
  }
  func.func @transform_2(%arg0: i32) -> (i32, i32) {
    %c0_i32 = arith.constant 0 : i32
    %c0_i32_0 = arith.constant 0 : i32
    return %arg0, %c0_i32 : i32, i32
  }
}

</mosaic_0001>

<llo_original>
// kernel: tpu_custom_call.1
$region0: #{tpu_custom_call.1}
  #allocation0 [shape = 'u32[]', space=smem, size = 0x4, offset = 0x4, fixed_abs, tag = 'smem constant byte address 0x4 - core index']
  #allocation1 [shape = 'u32[144,128]{1,0:T(1,128)}', space=vmem, size = 0x12000, scoped, tag = 'internal scratch']
  %s0 = inlined_call_operand.vmem [shape: s32[16,1], index: 0, kind: input, shape index: {}]
  %s1 = inlined_call_operand.hbm [shape: f32[128,128], index: 1, kind: input, shape index: {}]
  %s2 = inlined_call_operand.hbm [shape: f32[16,128], index: 2, kind: output, shape index: {}]
  %s3 = sld [smem:[#allocation0]]
  $region22: #{tpu_custom_call.1} parent=0
    _
  %s5 = ssub.s32 1, %s3
  %s6 = scalar_select 0, %s5, %s3
  $region1: #{tpu_custom_call.1} parent=0
    #allocation2 [shape = 'u8[65536]{0}', space=vmem, size = 0x10000, scoped, tag = 'input window, operand 1, single buffered']
    #allocation3 [shape = 's32[1]{0}', space=sflag, size = 0x4, scoped, tag = 'scoped memory for tpu_custom_call.1']
    #allocation4 [shape = 's32[1]{0}', space=sflag, size = 0x4, scoped, tag = 'scoped memory for tpu_custom_call.1']
    #allocation5 [shape = 'u8[8192]{0}', space=vmem, size = 0x2000, scoped, tag = 'output window, operand 0, single buffered']
    %7 = vsyncpa [#allocation3], 0
    %8 = vsyncpa [#allocation4], 0
    // Predicated region
    $region2: #{tpu_custom_call.1} parent=1 // pred_check
      _
    $region3: #{tpu_custom_call.1} parent=1 // pred_check_branch
      %10 = sbr.rel (0) target = $region5
    $region4: #{tpu_custom_call.1} parent=1 // pred_region
      _
    $region5: #{tpu_custom_call.1} parent=1 // pred_fallthru
      _
    // Predicated region
    $region6: #{tpu_custom_call.1} parent=1 // pred_check
      _
    $region7: #{tpu_custom_call.1} parent=1 // pred_check_branch
      %12 = sbr.rel (0) target = $region9
    $region8: #{tpu_custom_call.1} parent=1 // pred_region
      %s14 = ssub.s32 2048, 2048
      %15 = vsyncadd [#allocation3], %s14
      %s16 = sshll.u32 [#allocation2], 4
      %s17 = int_to_ptr.vmem [resolvable:$true] %s16
      %22 = dma.hbm_to_vmem [thread:$0]  %s1, 2048, %s17, [#allocation3], 128, 128, 8
    $region9: #{tpu_custom_call.1} parent=1 // pred_fallthru
      _
    // Predicated region
    $region10: #{tpu_custom_call.1} parent=1 // pred_check
      _
    $region11: #{tpu_custom_call.1} parent=1 // pred_check_branch
      %24 = sbr.rel (0) target = $region13
    $region12: #{tpu_custom_call.1} parent=1 // pred_region
      %25 = dma.done [#allocation3], 2048
    $region13: #{tpu_custom_call.1} parent=1 // pred_fallthru
      _
    %v26 = vlaneseq
    %v27 = vand.u32 %v26, 127
    %v28 = vld [vmem:[%s0] sm:$0xff]
    %v29 = vld [vmem:[%s0 + $0x8] sm:$0xff]
    %30 = vset.pattern.permute.xlu0 0
    %31 = vperm.xlu0 %30, %v28
    %v32 = vpop.permute.xlu0 %31
    %33 = vset.pattern.permute.xlu0 0
    %34 = vperm.xlu0 %33, %v29
    %v35 = vpop.permute.xlu0 %34
    %vm36 = vcmp.eq.s32.totalorder %v32, %v27
    %vm37 = vcmp.eq.s32.totalorder %v35, %v27
    %v38 = vsel %vm36, 1, 0
    %v39 = vsel %vm37, 1, 0
    %v40 = vcvt.s32.f32 %v38
    %v41 = vcvt.s32.f32 %v39
    %v42 = vld [vmem:[#allocation2] sm:$0xff]
    %v43 = vld [vmem:[#allocation2 + $0x8] sm:$0xff]
    %v44 = vld [vmem:[#allocation2 + $0x10] sm:$0xff]
    %v45 = vld [vmem:[#allocation2 + $0x18] sm:$0xff]
    %v46 = vld [vmem:[#allocation2 + $0x20] sm:$0xff]
    %v47 = vld [vmem:[#allocation2 + $0x28] sm:$0xff]
    %v48 = vld [vmem:[#allocation2 + $0x30] sm:$0xff]
    %v49 = vld [vmem:[#allocation2 + $0x38] sm:$0xff]
    %v50 = vld [vmem:[#allocation2 + $0x40] sm:$0xff]
    %v51 = vld [vmem:[#allocation2 + $0x48] sm:$0xff]
    %v52 = vld [vmem:[#allocation2 + $0x50] sm:$0xff]
    %v53 = vld [vmem:[#allocation2 + $0x58] sm:$0xff]
    %v54 = vld [vmem:[#allocation2 + $0x60] sm:$0xff]
    %v55 = vld [vmem:[#allocation2 + $0x68] sm:$0xff]
    %v56 = vld [vmem:[#allocation2 + $0x70] sm:$0xff]
    %v57 = vld [vmem:[#allocation2 + $0x78] sm:$0xff]
    %58 = vmatprep.subr.mxu0 0.0
    %59 = vmatpush1.msra.mxu0 %v42
    %60 = vmatprep.subr.mxu0 0.0
    %61 = vmatpush1.msra.mxu0 %v43
    %62 = vmatprep.subr.mxu0 0.0
    %63 = vmatpush1.msra.mxu0 %v44
    %64 = vmatprep.subr.mxu0 0.0
    %65 = vmatpush1.msra.mxu0 %v45
    %66 = vmatprep.subr.mxu0 0.0
    %67 = vmatpush1.msra.mxu0 %v46
    %68 = vmatprep.subr.mxu0 0.0
    %69 = vmatpush1.msra.mxu0 %v47
    %70 = vmatprep.subr.mxu0 0.0
    %71 = vmatpush1.msra.mxu0 %v48
    %72 = vmatprep.subr.mxu0 0.0
    %73 = vmatpush1.msra.mxu0 %v49
    %74 = vmatprep.subr.mxu0 0.0
    %75 = vmatpush1.msra.mxu0 %v50
    %76 = vmatprep.subr.mxu0 0.0
    %77 = vmatpush1.msra.mxu0 %v51
    %78 = vmatprep.subr.mxu0 0.0
    %79 = vmatpush1.msra.mxu0 %v52
    %80 = vmatprep.subr.mxu0 0.0
    %81 = vmatpush1.msra.mxu0 %v53
    %82 = vmatprep.subr.mxu0 0.0
    %83 = vmatpush1.msra.mxu0 %v54
    %84 = vmatprep.subr.mxu0 0.0
    %85 = vmatpush1.msra.mxu0 %v55
    %86 = vmatprep.subr.mxu0 0.0
    %87 = vmatpush1.msra.mxu0 %v56
    %88 = vmatprep.subr.mxu0 0.0
    %89 = vmatpush1.msra.mxu0 %v57
    %90 = vmatprep.subr.mxu0 0.0
    %91 = vmatpush1.msra.mxu0 0.0
    %92 = vmatprep.subr.mxu0 0.0
    %93 = vmatpush1.msra.mxu0 0.0
    %94 = vmatprep.subr.mxu0 0.0
    %95 = vmatpush1.msra.mxu0 0.0
    %96 = vmatprep.subr.mxu0 0.0
    %97 = vmatpush1.msra.mxu0 0.0
    %98 = vmatprep.subr.mxu0 0.0
    %99 = vmatpush1.msra.mxu0 0.0
    %100 = vmatprep.subr.mxu0 0.0
    %101 = vmatpush1.msra.mxu0 0.0
    %102 = vmatprep.subr.mxu0 0.0
    %103 = vmatpush1.msra.mxu0 0.0
    %104 = vmatprep.subr.mxu0 0.0
    %105 = vmatpush1.msra.mxu0 0.0
    %106 = vmatprep.subr.mxu0 0.0
    %107 = vmatpush1.msra.mxu0 0.0
    %108 = vmatprep.subr.mxu0 0.0
    %109 = vmatpush1.msra.mxu0 0.0
    %110 = vmatprep.subr.mxu0 0.0
    %111 = vmatpush1.msra.mxu0 0.0
    %112 = vmatprep.subr.mxu0 0.0
    %113 = vmatpush1.msra.mxu0 0.0
    %114 = vmatprep.subr.mxu0 0.0
    %115 = vmatpush1.msra.mxu0 0.0
    %116 = vmatprep.subr.mxu0 0.0
    %117 = vmatpush1.msra.mxu0 0.0
    %118 = vmatprep.subr.mxu0 0.0
    %119 = vmatpush1.msra.mxu0 0.0
    %120 = vmatprep.subr.mxu0 0.0
    %121 = vmatpush1.msra.mxu0 0.0
    %122 = vmatprep.mubr.f32.mxu0 0.0
    %123 = vmatmul.mubr.f32.gmra.mrb[0].mxu0 %v40
    %v124 = vpop.f32.mrb[0].mxu0
    %v125 = vadd.f32 0.0, %v124
    %v126 = vpop.f32.mrb[0].mxu0
    %127 = vmatprep.mubr.f32.mxu0 0.0
    %128 = vmatmul.mubr.f32.gmra.mrb[0].mxu0 %v41
    %v129 = vpop.f32.mrb[0].mxu0
    %v130 = vadd.f32 0.0, %v129
    %v131 = vpop.f32.mrb[0].mxu0
    %132 = vdwg.mxu0
    %133 = vst [vmem:[#allocation5] sm:$0xff] %v125
    %134 = vst [vmem:[#allocation5 + $0x8] sm:$0xff] %v130
    // Predicated region
    $region14: #{tpu_custom_call.1} parent=1 // pred_check
      _
    $region15: #{tpu_custom_call.1} parent=1 // pred_check_branch
      %136 = sbr.rel (0) target = $region17
    $region16: #{tpu_custom_call.1} parent=1 // pred_region
      %s138 = ssub.s32 256, 256
      %139 = vsyncadd [#allocation4], %s138
      %s140 = sshll.u32 [#allocation5], 4
      %s141 = int_to_ptr.vmem [resolvable:$true] %s140
      %146 = dma.vmem_to_hbm [thread:$0]  %s141, 256, %s2, [#allocation4], 128, 128, 8
    $region17: #{tpu_custom_call.1} parent=1 // pred_fallthru
      _
    // Predicated region
    $region18: #{tpu_custom_call.1} parent=1 // pred_check
      _
    $region19: #{tpu_custom_call.1} parent=1 // pred_check_branch
      %148 = sbr.rel (0) target = $region21
    $region20: #{tpu_custom_call.1} parent=1 // pred_region
      %149 = dma.done [#allocation4], 256
    $region21: #{tpu_custom_call.1} parent=1 // pred_fallthru
      _
    %150 = vsyncpa [#allocation3], 1
    %151 = vsyncpa [#allocation4], 1

</llo_original>
